<compile_context>
chip_gen: v7x
topology: tpu7x:2x2x1
jax: 0.10.0
libtpu: 0.0.40
codegen_flags: <defaults>
</compile_context>

<pallas_src>
import functools

import numpy as np
import jax
import jax.numpy as jnp
from jax.experimental import pallas as pl
from jax.experimental.pallas import tpu as pltpu

_BN_EPS = 1e-5


def bottleneck_kernel(x_ref, w1_ref, b1_ref, w2_ref, b2_ref, w3_ref, b3_ref,
                      mask_ref, o_ref, *, W):
    # x_ref block: (NB, Cin, HW) bf16 — channel-major, lane-dense on H*W.
    NB, _, HW = x_ref.shape
    L = NB * HW

    # ---- conv1 (1x1) + folded bn1 + relu -----------------------------------
    # One (P,Cin)@(Cin,HW) bf16 MXU matmul per packed image (f32 accumulate);
    # bias + ReLU applied once on the packed (P, NB*HW) activation.
    w1 = w1_ref[...]                                          # (P, Cin) bf16
    h = jnp.concatenate(
        [jnp.dot(w1, x_ref[nb], preferred_element_type=jnp.float32)
         for nb in range(NB)],
        axis=1)                                               # (P, L) f32
    h = jnp.maximum(h + b1_ref[...], 0.0)

    # ---- conv2 (3x3 depthwise, stride=1, pad=1) + folded bn2 + relu --------
    # Register-resident XLU rolls over the flattened packed spatial axis with
    # FACTORED edge masks.  Mask rows (per-image, host-tiled NB times):
    #   0: neighbor (y, x-1) in image     1: neighbor (y, x+1) in image
    #   2: neighbor (y-1, x) in image     3: neighbor (y+1, x) in image
    # Column masks are applied before the row roll; row masks after it — this
    # zeroes every out-of-image neighbor, including roll wrap and cross-image
    # positions (wrap positions are a subset of the masked positions).
    w2 = w2_ref[...]                                          # (P, 9) f32, tap = (dy+1)*3 + (dx+1)
    m = mask_ref[...]                                         # (4, L) f32
    h_xm = pltpu.roll(h, 1, axis=1) * m[0:1]                  # value at (y, x-1)
    h_xp = pltpu.roll(h, L - 1, axis=1) * m[1:2]              # value at (y, x+1)

    def row_sum(dy):                                          # weighted sum over dx
        base = (dy + 1) * 3
        return (h_xm * w2[:, base + 0:base + 1]
                + h * w2[:, base + 1:base + 2]
                + h_xp * w2[:, base + 2:base + 3])

    acc = row_sum(0)                                          # center row
    acc = acc + pltpu.roll(row_sum(-1), W % L, axis=1) * m[2:3]        # row y-1
    acc = acc + pltpu.roll(row_sum(1), (L - W) % L, axis=1) * m[3:4]   # row y+1
    h2 = jnp.maximum(acc + b2_ref[...], 0.0)                  # (P, L) f32

    # ---- conv3 (1x1) + folded bn3 (no relu) --------------------------------
    # Single packed (Cout,P)@(P, NB*HW) bf16 MXU matmul (f32 accumulate), then
    # lane-dense per-image stores.
    out = jnp.dot(w3_ref[...], h2.astype(jnp.bfloat16),
                  preferred_element_type=jnp.float32)         # (Cout, L) f32
    b3 = b3_ref[...]
    for nb in range(NB):
        o_ref[nb] = (out[:, nb * HW:(nb + 1) * HW] + b3).astype(o_ref.dtype)


def _edge_masks(H, W, NB):
    """(4, NB*H*W) float32 factored edge masks (per-image, tiled NB times)."""
    yy, xx = np.meshgrid(np.arange(H), np.arange(W), indexing="ij")
    rows = np.stack([
        (xx >= 1),          # neighbor (y, x-1) in image
        (xx <= W - 2),      # neighbor (y, x+1) in image
        (yy >= 1),          # neighbor (y-1, x) in image
        (yy <= H - 2),      # neighbor (y+1, x) in image
    ]).astype(np.float32).reshape(4, H * W)
    return jnp.asarray(np.tile(rows, (1, NB)))


def _pick_nb(N, Cin, Cout, P, HW, budget_bytes):
    """Largest divisor NB of N whose per-step working set fits the VMEM budget."""
    def est(nb):
        l = nb * HW
        return (2 * nb * Cin * HW * 2       # double-buffered x blocks (bf16)
                + 2 * nb * Cout * HW * 4    # double-buffered out blocks (f32)
                + 6 * P * l * 4             # h, h_xm, h_xp, row sums/acc, h2, out
                + 4 * l * 4)                # edge masks
    nb = 1
    for cand in range(2, N + 1):
        if N % cand == 0 and est(cand) <= budget_bytes:
            nb = cand
    return nb


def bottleneck_forward(x_nchw, params, stride, *, vmem_budget_bytes=20 * 1024 * 1024):
    """Forward pass of BottleNeck. x_nchw: (N, Cin, H, W) float32 (NCHW)."""
    if stride != 1:
        # TODO(synk): the reference forward for stride != 1 adds an *identity*
        # skip to a spatially-downsampled tensor (shape-inconsistent in the
        # original PyTorch code); the strided depthwise path is not implemented.
        raise NotImplementedError("Only stride == 1 is implemented.")

    N, Cin, H, W = x_nchw.shape
    HW = H * W
    P = params["w1"].shape[0]
    Cout = params["w3"].shape[0]
    if HW % 128 != 0:
        # TODO(synk): odd spatial sizes need lane padding of the flattened
        # spatial axis; not required for the shapes exercised here.
        raise NotImplementedError("H*W must be a multiple of 128.")

    NB = _pick_nb(N, Cin, Cout, P, HW, vmem_budget_bytes)   # images per grid step
    G = N // NB
    L = NB * HW

    x_flat = x_nchw.reshape(N, Cin, HW).astype(jnp.bfloat16)   # free reshape + bf16
    masks = _edge_masks(H, W, NB)

    flops = 2 * N * HW * (Cin * P + 9 * P + P * Cout)
    bytes_accessed = (2 * N * Cin * HW                 # x (bf16)
                      + 4 * N * Cout * HW              # out (f32)
                      + 2 * (P * Cin + Cout * P)       # bf16 weights (fetched once)
                      + 4 * (P * 9 + 2 * P + Cout)     # f32 w2 + biases
                      + 4 * 4 * L)                     # edge masks (fetched once)

    kernel = functools.partial(bottleneck_kernel, W=W)

    out_flat = pl.pallas_call(
        kernel,
        out_shape=jax.ShapeDtypeStruct((N, Cout, HW), jnp.float32),
        grid_spec=pltpu.PrefetchScalarGridSpec(
            num_scalar_prefetch=0,
            grid=(G,),                                         # NB images per step
            in_specs=[
                pl.BlockSpec((NB, Cin, HW), lambda g: (g, 0, 0)),   # x (bf16)
                pl.BlockSpec((P, Cin), lambda g: (0, 0)),           # w1 (bf16, bn1 folded)
                pl.BlockSpec((P, 1), lambda g: (0, 0)),             # b1
                pl.BlockSpec((P, 9), lambda g: (0, 0)),             # w2 (f32, bn2 folded)
                pl.BlockSpec((P, 1), lambda g: (0, 0)),             # b2
                pl.BlockSpec((Cout, P), lambda g: (0, 0)),          # w3 (bf16, bn3 folded)
                pl.BlockSpec((Cout, 1), lambda g: (0, 0)),          # b3
                pl.BlockSpec((4, L), lambda g: (0, 0)),             # factored edge masks
            ],
            out_specs=pl.BlockSpec((NB, Cout, HW), lambda g: (g, 0, 0)),
        ),
        compiler_params=pltpu.CompilerParams(
            dimension_semantics=("parallel",),
            vmem_limit_bytes=48 * 1024 * 1024,   # < 64 MiB physical on v7x
        ),
        cost_estimate=pl.CostEstimate(flops=flops, transcendentals=0,
                                      bytes_accessed=bytes_accessed),
    )(x_flat, params["w1"], params["b1"], params["w2"], params["b2"],
      params["w3"], params["b3"], masks)

    # (N, Cout, H*W) -> NCHW; pure reshape, no transpose.
    # stride == 1 branch of the reference forward returns `out` only
    # (the skip Sequential is never applied when stride == 1).
    return out_flat.reshape(N, Cout, H, W)


def init_raw_params(key, in_planes, out_planes, expansion):
    """Deterministic synthetic parameters in PyTorch-equivalent layouts."""
    planes = expansion * in_planes
    k1, k2, k3, k4, k5, k6 = jax.random.split(key, 6)

    w1 = 0.3 * jax.random.normal(k1, (planes, in_planes), jnp.float32)   # conv1 (P,Cin,1,1)
    w2 = 0.3 * jax.random.normal(k2, (planes, 3, 3), jnp.float32)        # conv2 (P,1,3,3) depthwise
    w3 = 0.3 * jax.random.normal(k3, (out_planes, planes), jnp.float32)  # conv3 (Cout,P,1,1)

    def bn(k, c):
        kg, kb, km, kv = jax.random.split(k, 4)
        gamma = 1.0 + 0.1 * jax.random.normal(kg, (c,), jnp.float32)
        beta = 0.1 * jax.random.normal(kb, (c,), jnp.float32)
        mean = 0.1 * jax.random.normal(km, (c,), jnp.float32)
        var = 1.0 + 0.1 * jax.random.uniform(kv, (c,), jnp.float32)
        return gamma, beta, mean, var

    return dict(w1=w1, w2=w2, w3=w3,
                bn1=bn(k4, planes), bn2=bn(k5, planes), bn3=bn(k6, out_planes))


def fold_params(raw):
    """Fold inference-mode BatchNorm into per-channel conv-weight scale + bias.

    Fold is done in float32; only afterwards are the 1x1 conv weights cast to
    bf16 for the MXU.  Depthwise taps and biases stay f32.

    # TODO(synk): BatchNorm uses running statistics (inference mode);
    # training-mode batch statistics are not computed in-kernel.
    """
    def fold(bn):
        gamma, beta, mean, var = bn
        s = gamma / jnp.sqrt(var + _BN_EPS)
        return s, beta - mean * s

    s1, b1 = fold(raw["bn1"])
    s2, b2 = fold(raw["bn2"])
    s3, b3 = fold(raw["bn3"])
    P = raw["w1"].shape[0]
    return dict(
        w1=(raw["w1"] * s1[:, None]).astype(jnp.bfloat16),   # (P, Cin) bf16
        b1=b1[:, None],                                      # (P, 1)   f32
        w2=raw["w2"].reshape(P, 9) * s2[:, None],            # (P, 9)   f32, tap = ky*3+kx
        b2=b2[:, None],                                      # (P, 1)   f32
        w3=(raw["w3"] * s3[:, None]).astype(jnp.bfloat16),   # (Cout,P) bf16
        b3=b3[:, None],                                      # (Cout,1) f32
    )


def reference_forward(x, raw, stride):
    """Pure-JAX float32 reference of the PyTorch forward (inference-mode BN)."""
    hp = jax.lax.Precision.HIGHEST

    def bn(y, p):
        gamma, beta, mean, var = (v.reshape(1, -1, 1, 1) for v in p)
        return (y - mean) / jnp.sqrt(var + _BN_EPS) * gamma + beta

    P = raw["w2"].shape[0]
    h = jnp.einsum("pc,nchw->nphw", raw["w1"], x, precision=hp)
    h = jax.nn.relu(bn(h, raw["bn1"]))
    h = jax.lax.conv_general_dilated(
        h, raw["w2"].reshape(P, 1, 3, 3), window_strides=(stride, stride),
        padding=((1, 1), (1, 1)), dimension_numbers=("NCHW", "OIHW", "NCHW"),
        feature_group_count=P, precision=hp)
    h = jax.nn.relu(bn(h, raw["bn2"]))
    h = jnp.einsum("op,nphw->nohw", raw["w3"], h, precision=hp)
    return bn(h, raw["bn3"])   # stride == 1 branch returns `out` only


if __name__ == "__main__":
    key = jax.random.PRNGKey(0)
    kx, kp = jax.random.split(key)

    # Shapes consistent with the module: in_planes=4, out_planes=8, expansion=2,
    # stride=1, input x of shape (N=2, Cin=4, H=16, W=16).
    in_planes, out_planes, expansion, stride = 4, 8, 2, 1
    N, H, W = 2, 16, 16

    x = jax.random.normal(kx, (N, in_planes, H, W), jnp.float32)
    raw = init_raw_params(kp, in_planes, out_planes, expansion)
    kparams = fold_params(raw)

    out = jax.block_until_ready(bottleneck_forward(x, kparams, stride))
    assert out.shape == (N, out_planes, H, W), out.shape

    ref = jax.block_until_ready(reference_forward(x, raw, stride))
    # Tolerance covers the deliberate bf16 cast of x/w1/w3/conv3-activation (the
    # f32 reference is exact); structural errors (wrong tap, mask, roll, fold,
    # batch-packing wrap) produce O(0.1-1) deviations and are still caught.
    np.testing.assert_allclose(np.asarray(out), np.asarray(ref),
                               rtol=2e-2, atol=2e-2)

    print("KERNEL_OK")
</pallas_src>

<mosaic_0001>
module attributes {stable_mosaic.version = 11 : i64} {
  func.func @bottleneck_kernel(%arg0: i32, %arg1: memref<2x4x256xbf16, #tpu.memory_space<vmem>>, %arg2: memref<8x4xbf16, #tpu.memory_space<vmem>>, %arg3: memref<8x1xf32, #tpu.memory_space<vmem>>, %arg4: memref<8x9xf32, #tpu.memory_space<vmem>>, %arg5: memref<8x1xf32, #tpu.memory_space<vmem>>, %arg6: memref<8x8xbf16, #tpu.memory_space<vmem>>, %arg7: memref<8x1xf32, #tpu.memory_space<vmem>>, %arg8: memref<4x512xf32, #tpu.memory_space<vmem>>, %arg9: memref<2x8x256xf32, #tpu.memory_space<vmem>>) attributes {dimension_semantics = [#tpu.dimension_semantics<parallel>], iteration_bounds = array<i64: 1>, scalar_prefetch = 0 : i64, scratch_operands = 0 : i64, tpu.core_type = #tpu.core_type<tc>, window_params = [{transform_indices = @transform_0, window_bounds = array<i64: 2, 4, 256>}, {pipeline_mode = #tpu.pipeline_mode<synchronous>, transform_indices = @transform_1, window_bounds = array<i64: 8, 4>}, {pipeline_mode = #tpu.pipeline_mode<synchronous>, transform_indices = @transform_2, window_bounds = array<i64: 8, 1>}, {pipeline_mode = #tpu.pipeline_mode<synchronous>, transform_indices = @transform_3, window_bounds = array<i64: 8, 9>}, {pipeline_mode = #tpu.pipeline_mode<synchronous>, transform_indices = @transform_4, window_bounds = array<i64: 8, 1>}, {pipeline_mode = #tpu.pipeline_mode<synchronous>, transform_indices = @transform_5, window_bounds = array<i64: 8, 8>}, {pipeline_mode = #tpu.pipeline_mode<synchronous>, transform_indices = @transform_6, window_bounds = array<i64: 8, 1>}, {pipeline_mode = #tpu.pipeline_mode<synchronous>, transform_indices = @transform_7, window_bounds = array<i64: 4, 512>}, {transform_indices = @transform_8, window_bounds = array<i64: 2, 8, 256>}]} {
    %c0 = arith.constant 0 : index
    %c0_0 = arith.constant 0 : index
    %0 = vector.load %arg2[%c0, %c0_0] : memref<8x4xbf16, #tpu.memory_space<vmem>>, vector<8x4xbf16>
    %c0_1 = arith.constant 0 : index
    %c0_2 = arith.constant 0 : index
    %c0_3 = arith.constant 0 : index
    %1 = vector.load %arg1[%c0_1, %c0_2, %c0_3] : memref<2x4x256xbf16, #tpu.memory_space<vmem>>, vector<1x4x256xbf16>
    %2 = vector.shape_cast %1 : vector<1x4x256xbf16> to vector<4x256xbf16>
    %cst = arith.constant dense<0.000000e+00> : vector<8x256xf32>
    %3 = tpu.matmul %0, %2, %cst {dimension_numbers = #tpu.dot_dimension_numbers<[1], [0], [0], [1], [0, 0, 1, 1], [], []>} : vector<8x4xbf16>, vector<4x256xbf16>, vector<8x256xf32> -> vector<8x256xf32>
    %c1 = arith.constant 1 : index
    %c0_4 = arith.constant 0 : index
    %c0_5 = arith.constant 0 : index
    %4 = vector.load %arg1[%c1, %c0_4, %c0_5] : memref<2x4x256xbf16, #tpu.memory_space<vmem>>, vector<1x4x256xbf16>
    %5 = vector.shape_cast %4 : vector<1x4x256xbf16> to vector<4x256xbf16>
    %cst_6 = arith.constant dense<0.000000e+00> : vector<8x256xf32>
    %6 = tpu.matmul %0, %5, %cst_6 {dimension_numbers = #tpu.dot_dimension_numbers<[1], [0], [0], [1], [0, 0, 1, 1], [], []>} : vector<8x4xbf16>, vector<4x256xbf16>, vector<8x256xf32> -> vector<8x256xf32>
    %7 = tpu.concatenate %3, %6 in 1 : vector<8x256xf32>, vector<8x256xf32> -> vector<8x512xf32>
    %c0_7 = arith.constant 0 : index
    %c0_8 = arith.constant 0 : index
    %8 = vector.load %arg3[%c0_7, %c0_8] : memref<8x1xf32, #tpu.memory_space<vmem>>, vector<8x1xf32>
    %9 = vector.broadcast %8 : vector<8x1xf32> to vector<8x512xf32>
    %10 = arith.addf %7, %9 : vector<8x512xf32>
    %cst_9 = arith.constant 0.000000e+00 : f32
    %11 = vector.broadcast %cst_9 : f32 to vector<8x512xf32>
    %12 = arith.maximumf %10, %11 : vector<8x512xf32>
    %c0_10 = arith.constant 0 : index
    %c0_11 = arith.constant 0 : index
    %13 = vector.load %arg4[%c0_10, %c0_11] : memref<8x9xf32, #tpu.memory_space<vmem>>, vector<8x9xf32>
    %c0_12 = arith.constant 0 : index
    %c0_13 = arith.constant 0 : index
    %14 = vector.load %arg8[%c0_12, %c0_13] : memref<4x512xf32, #tpu.memory_space<vmem>>, vector<4x512xf32>
    %c1_i32 = arith.constant 1 : i32
    %15 = tpu.dynamic_rotate %12 by %c1_i32 dim 1 : vector<8x512xf32>, i32 -> vector<8x512xf32>
    %16 = vector.extract_strided_slice %14 {offsets = [0, 0], sizes = [1, 512], strides = [1, 1]} : vector<4x512xf32> to vector<1x512xf32>
    %17 = vector.broadcast %16 : vector<1x512xf32> to vector<8x512xf32>
    %18 = arith.mulf %15, %17 : vector<8x512xf32>
    %c511_i32 = arith.constant 511 : i32
    %19 = tpu.dynamic_rotate %12 by %c511_i32 dim 1 : vector<8x512xf32>, i32 -> vector<8x512xf32>
    %20 = vector.extract_strided_slice %14 {offsets = [1, 0], sizes = [1, 512], strides = [1, 1]} : vector<4x512xf32> to vector<1x512xf32>
    %21 = vector.broadcast %20 : vector<1x512xf32> to vector<8x512xf32>
    %22 = arith.mulf %19, %21 : vector<8x512xf32>
    %23 = vector.extract_strided_slice %13 {offsets = [0, 3], sizes = [8, 1], strides = [1, 1]} : vector<8x9xf32> to vector<8x1xf32>
    %24 = vector.broadcast %23 : vector<8x1xf32> to vector<8x512xf32>
    %25 = arith.mulf %18, %24 : vector<8x512xf32>
    %26 = vector.extract_strided_slice %13 {offsets = [0, 4], sizes = [8, 1], strides = [1, 1]} : vector<8x9xf32> to vector<8x1xf32>
    %27 = vector.broadcast %26 : vector<8x1xf32> to vector<8x512xf32>
    %28 = arith.mulf %12, %27 : vector<8x512xf32>
    %29 = arith.addf %25, %28 : vector<8x512xf32>
    %30 = vector.extract_strided_slice %13 {offsets = [0, 5], sizes = [8, 1], strides = [1, 1]} : vector<8x9xf32> to vector<8x1xf32>
    %31 = vector.broadcast %30 : vector<8x1xf32> to vector<8x512xf32>
    %32 = arith.mulf %22, %31 : vector<8x512xf32>
    %33 = arith.addf %29, %32 : vector<8x512xf32>
    %34 = vector.extract_strided_slice %13 {offsets = [0, 0], sizes = [8, 1], strides = [1, 1]} : vector<8x9xf32> to vector<8x1xf32>
    %35 = vector.broadcast %34 : vector<8x1xf32> to vector<8x512xf32>
    %36 = arith.mulf %18, %35 : vector<8x512xf32>
    %37 = vector.extract_strided_slice %13 {offsets = [0, 1], sizes = [8, 1], strides = [1, 1]} : vector<8x9xf32> to vector<8x1xf32>
    %38 = vector.broadcast %37 : vector<8x1xf32> to vector<8x512xf32>
    %39 = arith.mulf %12, %38 : vector<8x512xf32>
    %40 = arith.addf %36, %39 : vector<8x512xf32>
    %41 = vector.extract_strided_slice %13 {offsets = [0, 2], sizes = [8, 1], strides = [1, 1]} : vector<8x9xf32> to vector<8x1xf32>
    %42 = vector.broadcast %41 : vector<8x1xf32> to vector<8x512xf32>
    %43 = arith.mulf %22, %42 : vector<8x512xf32>
    %44 = arith.addf %40, %43 : vector<8x512xf32>
    %c16_i32 = arith.constant 16 : i32
    %45 = tpu.dynamic_rotate %44 by %c16_i32 dim 1 : vector<8x512xf32>, i32 -> vector<8x512xf32>
    %46 = vector.extract_strided_slice %14 {offsets = [2, 0], sizes = [1, 512], strides = [1, 1]} : vector<4x512xf32> to vector<1x512xf32>
    %47 = vector.broadcast %46 : vector<1x512xf32> to vector<8x512xf32>
    %48 = arith.mulf %45, %47 : vector<8x512xf32>
    %49 = arith.addf %33, %48 : vector<8x512xf32>
    %50 = vector.extract_strided_slice %13 {offsets = [0, 6], sizes = [8, 1], strides = [1, 1]} : vector<8x9xf32> to vector<8x1xf32>
    %51 = vector.broadcast %50 : vector<8x1xf32> to vector<8x512xf32>
    %52 = arith.mulf %18, %51 : vector<8x512xf32>
    %53 = vector.extract_strided_slice %13 {offsets = [0, 7], sizes = [8, 1], strides = [1, 1]} : vector<8x9xf32> to vector<8x1xf32>
    %54 = vector.broadcast %53 : vector<8x1xf32> to vector<8x512xf32>
    %55 = arith.mulf %12, %54 : vector<8x512xf32>
    %56 = arith.addf %52, %55 : vector<8x512xf32>
    %57 = vector.extract_strided_slice %13 {offsets = [0, 8], sizes = [8, 1], strides = [1, 1]} : vector<8x9xf32> to vector<8x1xf32>
    %58 = vector.broadcast %57 : vector<8x1xf32> to vector<8x512xf32>
    %59 = arith.mulf %22, %58 : vector<8x512xf32>
    %60 = arith.addf %56, %59 : vector<8x512xf32>
    %c496_i32 = arith.constant 496 : i32
    %61 = tpu.dynamic_rotate %60 by %c496_i32 dim 1 : vector<8x512xf32>, i32 -> vector<8x512xf32>
    %62 = vector.extract_strided_slice %14 {offsets = [3, 0], sizes = [1, 512], strides = [1, 1]} : vector<4x512xf32> to vector<1x512xf32>
    %63 = vector.broadcast %62 : vector<1x512xf32> to vector<8x512xf32>
    %64 = arith.mulf %61, %63 : vector<8x512xf32>
    %65 = arith.addf %49, %64 : vector<8x512xf32>
    %c0_14 = arith.constant 0 : index
    %c0_15 = arith.constant 0 : index
    %66 = vector.load %arg5[%c0_14, %c0_15] : memref<8x1xf32, #tpu.memory_space<vmem>>, vector<8x1xf32>
    %67 = vector.broadcast %66 : vector<8x1xf32> to vector<8x512xf32>
    %68 = arith.addf %65, %67 : vector<8x512xf32>
    %cst_16 = arith.constant 0.000000e+00 : f32
    %69 = vector.broadcast %cst_16 : f32 to vector<8x512xf32>
    %70 = arith.maximumf %68, %69 : vector<8x512xf32>
    %c0_17 = arith.constant 0 : index
    %c0_18 = arith.constant 0 : index
    %71 = vector.load %arg6[%c0_17, %c0_18] : memref<8x8xbf16, #tpu.memory_space<vmem>>, vector<8x8xbf16>
    %72 = arith.truncf %70 : vector<8x512xf32> to vector<8x512xbf16>
    %cst_19 = arith.constant dense<0.000000e+00> : vector<8x512xf32>
    %73 = tpu.matmul %71, %72, %cst_19 {dimension_numbers = #tpu.dot_dimension_numbers<[1], [0], [0], [1], [0, 0, 1, 1], [], []>} : vector<8x8xbf16>, vector<8x512xbf16>, vector<8x512xf32> -> vector<8x512xf32>
    %c0_20 = arith.constant 0 : index
    %c0_21 = arith.constant 0 : index
    %74 = vector.load %arg7[%c0_20, %c0_21] : memref<8x1xf32, #tpu.memory_space<vmem>>, vector<8x1xf32>
    %75 = vector.extract_strided_slice %73 {offsets = [0, 0], sizes = [8, 256], strides = [1, 1]} : vector<8x512xf32> to vector<8x256xf32>
    %76 = vector.broadcast %74 : vector<8x1xf32> to vector<8x256xf32>
    %77 = arith.addf %75, %76 : vector<8x256xf32>
    %c0_22 = arith.constant 0 : index
    %c0_23 = arith.constant 0 : index
    %c0_24 = arith.constant 0 : index
    %78 = vector.load %arg9[%c0_22, %c0_23, %c0_24] : memref<2x8x256xf32, #tpu.memory_space<vmem>>, vector<1x8x256xf32>
    %79 = vector.shape_cast %78 : vector<1x8x256xf32> to vector<8x256xf32>
    %80 = vector.shape_cast %77 : vector<8x256xf32> to vector<1x8x256xf32>
    tpu.vector_store %arg9[%c0_22, %c0_23, %c0_24], %80 {strides = array<i32>} : memref<2x8x256xf32, #tpu.memory_space<vmem>>, vector<1x8x256xf32>,
    %81 = vector.extract_strided_slice %73 {offsets = [0, 256], sizes = [8, 256], strides = [1, 1]} : vector<8x512xf32> to vector<8x256xf32>
    %82 = vector.broadcast %74 : vector<8x1xf32> to vector<8x256xf32>
    %83 = arith.addf %81, %82 : vector<8x256xf32>
    %c1_25 = arith.constant 1 : index
    %c0_26 = arith.constant 0 : index
    %c0_27 = arith.constant 0 : index
    %84 = vector.load %arg9[%c1_25, %c0_26, %c0_27] : memref<2x8x256xf32, #tpu.memory_space<vmem>>, vector<1x8x256xf32>
    %85 = vector.shape_cast %84 : vector<1x8x256xf32> to vector<8x256xf32>
    %86 = vector.shape_cast %83 : vector<8x256xf32> to vector<1x8x256xf32>
    tpu.vector_store %arg9[%c1_25, %c0_26, %c0_27], %86 {strides = array<i32>} : memref<2x8x256xf32, #tpu.memory_space<vmem>>, vector<1x8x256xf32>,
    return
  }
  func.func @transform_0(%arg0: i32) -> (i32, i32, i32) {
    %c0_i32 = arith.constant 0 : i32
    %c0_i32_0 = arith.constant 0 : i32
    %c0_i32_1 = arith.constant 0 : i32
    return %arg0, %c0_i32, %c0_i32_0 : i32, i32, i32
  }
  func.func @transform_1(%arg0: i32) -> (i32, i32) {
    %c0_i32 = arith.constant 0 : i32
    %c0_i32_0 = arith.constant 0 : i32
    %c0_i32_1 = arith.constant 0 : i32
    return %c0_i32, %c0_i32_0 : i32, i32
  }
  func.func @transform_2(%arg0: i32) -> (i32, i32) {
    %c0_i32 = arith.constant 0 : i32
    %c0_i32_0 = arith.constant 0 : i32
    %c0_i32_1 = arith.constant 0 : i32
    return %c0_i32, %c0_i32_0 : i32, i32
  }
  func.func @transform_3(%arg0: i32) -> (i32, i32) {
    %c0_i32 = arith.constant 0 : i32
    %c0_i32_0 = arith.constant 0 : i32
    %c0_i32_1 = arith.constant 0 : i32
    return %c0_i32, %c0_i32_0 : i32, i32
  }
  func.func @transform_4(%arg0: i32) -> (i32, i32) {
    %c0_i32 = arith.constant 0 : i32
    %c0_i32_0 = arith.constant 0 : i32
    %c0_i32_1 = arith.constant 0 : i32
    return %c0_i32, %c0_i32_0 : i32, i32
  }
  func.func @transform_5(%arg0: i32) -> (i32, i32) {
    %c0_i32 = arith.constant 0 : i32
    %c0_i32_0 = arith.constant 0 : i32
    %c0_i32_1 = arith.constant 0 : i32
    return %c0_i32, %c0_i32_0 : i32, i32
  }
  func.func @transform_6(%arg0: i32) -> (i32, i32) {
    %c0_i32 = arith.constant 0 : i32
    %c0_i32_0 = arith.constant 0 : i32
    %c0_i32_1 = arith.constant 0 : i32
    return %c0_i32, %c0_i32_0 : i32, i32
  }
  func.func @transform_7(%arg0: i32) -> (i32, i32) {
    %c0_i32 = arith.constant 0 : i32
    %c0_i32_0 = arith.constant 0 : i32
    %c0_i32_1 = arith.constant 0 : i32
    return %c0_i32, %c0_i32_0 : i32, i32
  }
  func.func @transform_8(%arg0: i32) -> (i32, i32, i32) {
    %c0_i32 = arith.constant 0 : i32
    %c0_i32_0 = arith.constant 0 : i32
    %c0_i32_1 = arith.constant 0 : i32
    return %arg0, %c0_i32, %c0_i32_0 : i32, i32, i32
  }
}

</mosaic_0001>

<llo_original>
// kernel: tpu_custom_call.1
$region0: #{tpu_custom_call.1}
  #allocation0 [shape = 'u32[]', space=smem, size = 0x4, offset = 0x4, fixed_abs, tag = 'smem constant byte address 0x4 - core index']
  #allocation1 [shape = 'u32[144,128]{1,0:T(1,128)}', space=vmem, size = 0x12000, scoped, tag = 'internal scratch']
  %s0 = inlined_call_operand.vmem [shape: bf16[2,4,256], index: 0, kind: input, shape index: {}]
  %s1 = inlined_call_operand.vmem [shape: bf16[8,4], index: 1, kind: input, shape index: {}]
  %s2 = inlined_call_operand.vmem [shape: f32[8,1], index: 2, kind: input, shape index: {}]
  %s3 = inlined_call_operand.vmem [shape: f32[8,9], index: 3, kind: input, shape index: {}]
  %s4 = inlined_call_operand.vmem [shape: f32[8,1], index: 4, kind: input, shape index: {}]
  %s5 = inlined_call_operand.vmem [shape: bf16[8,8], index: 5, kind: input, shape index: {}]
  %s6 = inlined_call_operand.vmem [shape: f32[8,1], index: 6, kind: input, shape index: {}]
  %s7 = inlined_call_operand.vmem [shape: f32[4,512], index: 7, kind: input, shape index: {}]
  %s8 = inlined_call_operand.hbm [shape: f32[2,8,256], index: 8, kind: output, shape index: {}]
  %s9 = sld [smem:[#allocation0]]
  $region42: #{tpu_custom_call.1} parent=0
    _
  %s11 = ssub.s32 1, %s9
  %s12 = scalar_select 0, %s11, %s9
  $region1: #{tpu_custom_call.1} parent=0
    #allocation2 [shape = 'u8[16384]{0}', space=vmem, size = 0x4000, scoped, tag = 'output window, operand 0, single buffered']
    #allocation3 [shape = 's32[1]{0}', space=sflag, size = 0x4, scoped, tag = 'scoped memory for tpu_custom_call.1']
    %13 = vsyncpa [#allocation3], 0
    // Predicated region
    $region2: #{tpu_custom_call.1} parent=1 // pred_check
      _
    $region3: #{tpu_custom_call.1} parent=1 // pred_check_branch
      %15 = sbr.rel (0) target = $region5
    $region4: #{tpu_custom_call.1} parent=1 // pred_region
      _
    $region5: #{tpu_custom_call.1} parent=1 // pred_fallthru
      _
    // Predicated region
    $region6: #{tpu_custom_call.1} parent=1 // pred_check
      _
    $region7: #{tpu_custom_call.1} parent=1 // pred_check_branch
      %17 = sbr.rel (0) target = $region9
    $region8: #{tpu_custom_call.1} parent=1 // pred_region
      _
    $region9: #{tpu_custom_call.1} parent=1 // pred_fallthru
      _
    // Predicated region
    $region10: #{tpu_custom_call.1} parent=1 // pred_check
      _
    $region11: #{tpu_custom_call.1} parent=1 // pred_check_branch
      %19 = sbr.rel (0) target = $region13
    $region12: #{tpu_custom_call.1} parent=1 // pred_region
      _
    $region13: #{tpu_custom_call.1} parent=1 // pred_fallthru
      _
    // Predicated region
    $region14: #{tpu_custom_call.1} parent=1 // pred_check
      _
    $region15: #{tpu_custom_call.1} parent=1 // pred_check_branch
      %21 = sbr.rel (0) target = $region17
    $region16: #{tpu_custom_call.1} parent=1 // pred_region
      _
    $region17: #{tpu_custom_call.1} parent=1 // pred_fallthru
      _
    // Predicated region
    $region18: #{tpu_custom_call.1} parent=1 // pred_check
      _
    $region19: #{tpu_custom_call.1} parent=1 // pred_check_branch
      %23 = sbr.rel (0) target = $region21
    $region20: #{tpu_custom_call.1} parent=1 // pred_region
      _
    $region21: #{tpu_custom_call.1} parent=1 // pred_fallthru
      _
    // Predicated region
    $region22: #{tpu_custom_call.1} parent=1 // pred_check
      _
    $region23: #{tpu_custom_call.1} parent=1 // pred_check_branch
      %25 = sbr.rel (0) target = $region25
    $region24: #{tpu_custom_call.1} parent=1 // pred_region
      _
    $region25: #{tpu_custom_call.1} parent=1 // pred_fallthru
      _
    // Predicated region
    $region26: #{tpu_custom_call.1} parent=1 // pred_check
      _
    $region27: #{tpu_custom_call.1} parent=1 // pred_check_branch
      %27 = sbr.rel (0) target = $region29
    $region28: #{tpu_custom_call.1} parent=1 // pred_region
      _
    $region29: #{tpu_custom_call.1} parent=1 // pred_fallthru
      _
    // Predicated region
    $region30: #{tpu_custom_call.1} parent=1 // pred_check
      _
    $region31: #{tpu_custom_call.1} parent=1 // pred_check_branch
      %29 = sbr.rel (0) target = $region33
    $region32: #{tpu_custom_call.1} parent=1 // pred_region
      _
    $region33: #{tpu_custom_call.1} parent=1 // pred_fallthru
      _
    %v31 = vld [vmem:[%s1] sm:$0xf]
    %v32 = vld [vmem:[%s0] sm:$0xf]
    %v35 = vunpack.c.l.s4 1983009808
    %v36 = vunpack.c.0.s8 %v35
    %v37 = vlaneseq
    %v38 = vshrl.u32 %v37, 7
    %v39 = vsub.s32 %v36, %v38
    %v40 = vrot.slane %v32, %v39
    %v41 = vcombine.high %v40, %v40
    %vm42 = vcmask 31744
    %v44 = vsel %vm42, %v31, 0
    %vm46 = vcmask 1041408
    %v48 = vsel %vm46, %v40, 0
    %v51 = vsel %vm46, %v41, 0
    %53 = vmatprep.subr.bf16.mxu0 %v51
    %54 = vmatpush1.bf16.msra.mxu0 %v48
    %55 = vmatprep.subr.bf16.mxu0 0
    %56 = vmatpush1.bf16.msra.mxu0 0
    %57 = vmatprep.subr.bf16.mxu0 0
    %58 = vmatpush1.bf16.msra.mxu0 0
    %59 = vmatprep.subr.bf16.mxu0 0
    %60 = vmatpush1.bf16.msra.mxu0 0
    %61 = vmatprep.subr.bf16.mxu0 0
    %62 = vmatpush1.bf16.msra.mxu0 0
    %63 = vmatprep.subr.bf16.mxu0 0
    %64 = vmatpush1.bf16.msra.mxu0 0
    %65 = vmatprep.subr.bf16.mxu0 0
    %66 = vmatpush1.bf16.msra.mxu0 0
    %67 = vmatprep.subr.bf16.mxu0 0
    %68 = vmatpush1.bf16.msra.mxu0 0
    %69 = vmatprep.subr.bf16.mxu0 0
    %70 = vmatpush1.bf16.msra.mxu0 0
    %71 = vmatprep.subr.bf16.mxu0 0
    %72 = vmatpush1.bf16.msra.mxu0 0
    %73 = vmatprep.subr.bf16.mxu0 0
    %74 = vmatpush1.bf16.msra.mxu0 0
    %75 = vmatprep.subr.bf16.mxu0 0
    %76 = vmatpush1.bf16.msra.mxu0 0
    %77 = vmatprep.subr.bf16.mxu0 0
    %78 = vmatpush1.bf16.msra.mxu0 0
    %79 = vmatprep.subr.bf16.mxu0 0
    %80 = vmatpush1.bf16.msra.mxu0 0
    %81 = vmatprep.subr.bf16.mxu0 0
    %82 = vmatpush1.bf16.msra.mxu0 0
    %83 = vmatprep.subr.bf16.mxu0 0
    %84 = vmatpush1.bf16.msra.mxu0 0
    %85 = vmatprep.mubr.bf16.mxu0 0
    %86 = vmatmul.mubr.bf16.gmra.mrb[0].mxu0 %v44
    %v87 = vpop.f32.mrb[0].mxu0
    %v88 = vadd.f32 0.0, %v87
    %v89 = vpop.f32.mrb[0].mxu0
    %v90 = vadd.f32 0.0, %v89
    %v91 = vpop.f32.mrb[0].mxu0
    %v92 = vpop.f32.mrb[0].mxu0
    %93 = vdwg.mxu0
    %s94 = scalar_lea.vmem %s0, 4
    %v95 = vld [vmem:[%s94] sm:$0xf]
    %v98 = vunpack.c.l.s4 1983009808
    %v99 = vunpack.c.0.s8 %v98
    %v100 = vlaneseq
    %v101 = vshrl.u32 %v100, 7
    %v102 = vsub.s32 %v99, %v101
    %v103 = vrot.slane %v95, %v102
    %v104 = vcombine.high %v103, %v103
    %v106 = vsel %vm46, %v103, 0
    %v109 = vsel %vm46, %v104, 0
    %111 = vmatprep.subr.bf16.mxu0 %v109
    %112 = vmatpush1.bf16.msra.mxu0 %v106
    %113 = vmatprep.subr.bf16.mxu0 0
    %114 = vmatpush1.bf16.msra.mxu0 0
    %115 = vmatprep.subr.bf16.mxu0 0
    %116 = vmatpush1.bf16.msra.mxu0 0
    %117 = vmatprep.subr.bf16.mxu0 0
    %118 = vmatpush1.bf16.msra.mxu0 0
    %119 = vmatprep.subr.bf16.mxu0 0
    %120 = vmatpush1.bf16.msra.mxu0 0
    %121 = vmatprep.subr.bf16.mxu0 0
    %122 = vmatpush1.bf16.msra.mxu0 0
    %123 = vmatprep.subr.bf16.mxu0 0
    %124 = vmatpush1.bf16.msra.mxu0 0
    %125 = vmatprep.subr.bf16.mxu0 0
    %126 = vmatpush1.bf16.msra.mxu0 0
    %127 = vmatprep.subr.bf16.mxu0 0
    %128 = vmatpush1.bf16.msra.mxu0 0
    %129 = vmatprep.subr.bf16.mxu0 0
    %130 = vmatpush1.bf16.msra.mxu0 0
    %131 = vmatprep.subr.bf16.mxu0 0
    %132 = vmatpush1.bf16.msra.mxu0 0
    %133 = vmatprep.subr.bf16.mxu0 0
    %134 = vmatpush1.bf16.msra.mxu0 0
    %135 = vmatprep.subr.bf16.mxu0 0
    %136 = vmatpush1.bf16.msra.mxu0 0
    %137 = vmatprep.subr.bf16.mxu0 0
    %138 = vmatpush1.bf16.msra.mxu0 0
    %139 = vmatprep.subr.bf16.mxu0 0
    %140 = vmatpush1.bf16.msra.mxu0 0
    %141 = vmatprep.subr.bf16.mxu0 0
    %142 = vmatpush1.bf16.msra.mxu0 0
    %143 = vmatprep.mubr.bf16.mxu0 0
    %144 = vmatmul.mubr.bf16.gmra.mrb[0].mxu0 %v44
    %v145 = vpop.f32.mrb[0].mxu0
    %v146 = vadd.f32 0.0, %v145
    %v147 = vpop.f32.mrb[0].mxu0
    %v148 = vadd.f32 0.0, %v147
    %v149 = vpop.f32.mrb[0].mxu0
    %v150 = vpop.f32.mrb[0].mxu0
    %151 = vdwg.mxu0
    %v152 = vld [vmem:[%s2] sm:$0xff]
    %154 = vset.pattern.permute.xlu0 0
    %155 = vperm.xlu0 %154, %v152
    %v156 = vpop.permute.xlu0 %155
    %v158 = vadd.f32 %v88, %v156
    %v159 = vadd.f32 %v90, %v156
    %v160 = vadd.f32 %v146, %v156
    %v161 = vadd.f32 %v148, %v156
    %v162 = vmax.f32 %v158, 0.0
    %v163 = vmax.f32 %v159, 0.0
    %v164 = vmax.f32 %v160, 0.0
    %v165 = vmax.f32 %v161, 0.0
    %v166 = vld [vmem:[%s3] sm:$0xff]
    %v167 = vld [vmem:[%s7] sm:$0xff]
    %v168 = vld [vmem:[%s7 + $0x8] sm:$0xff]
    %169 = vrot.lane.b32.xlu0 %v162, 1
    %v170 = vpop.permute.xlu0 %169
    %171 = vrot.lane.b32.xlu0 %v163, 1
    %v172 = vpop.permute.xlu0 %171
    %173 = vrot.lane.b32.xlu0 %v164, 1
    %v174 = vpop.permute.xlu0 %173
    %175 = vrot.lane.b32.xlu0 %v165, 1
    %v176 = vpop.permute.xlu0 %175
    %v177 = vlaneseq
    %v178 = vand.u32 %v177, 127
    %vm179 = vcmp.lt.s32.totalorder %v178, 1
    %v180 = vsel %vm179, %v174, %v176
    %v181 = vsel %vm179, %v172, %v174
    %v182 = vsel %vm179, %v170, %v172
    %v183 = vsel %vm179, %v176, %v170
    %v186 = vlaneseq
    %v187 = vshrl.u32 %v186, 7
    %v188 = vsub.s32 0, %v187
    %v189 = vrot.slane %v167, %v188
    %v190 = vlaneseq
    %v191 = vshrl.u32 %v190, 7
    %v192 = vsub.s32 4, %v191
    %v193 = vrot.slane %v167, %v192
    %v194 = vlaneseq
    %v195 = vshrl.u32 %v194, 7
    %v196 = vsub.s32 0, %v195
    %v197 = vrot.slane %v168, %v196
    %v198 = vlaneseq
    %v199 = vshrl.u32 %v198, 7
    %v200 = vsub.s32 4, %v199
    %v201 = vrot.slane %v168, %v200
    %v206 = vlaneseq
    %v207 = vshrl.u32 %v206, 7
    %v208 = vsub.s32 0, %v207
    %v209 = vrot.slane %v189, %v208
    %v210 = vlaneseq
    %v211 = vshrl.u32 %v210, 7
    %v212 = vsub.s32 0, %v211
    %v213 = vrot.slane %v193, %v212
    %v214 = vlaneseq
    %v215 = vshrl.u32 %v214, 7
    %v216 = vsub.s32 0, %v215
    %v217 = vrot.slane %v197, %v216
    %v218 = vlaneseq
    %v219 = vshrl.u32 %v218, 7
    %v220 = vsub.s32 0, %v219
    %v221 = vrot.slane %v201, %v220
    %v222 = vmul.f32 %v183, %v209
    %v223 = vmul.f32 %v182, %v213
    %v224 = vmul.f32 %v181, %v217
    %v225 = vmul.f32 %v180, %v221
    %226 = vrot.lane.b32.xlu0 %v162, 127
    %v227 = vpop.permute.xlu0 %226
    %228 = vrot.lane.b32.xlu0 %v163, 127
    %v229 = vpop.permute.xlu0 %228
    %230 = vrot.lane.b32.xlu0 %v164, 127
    %v231 = vpop.permute.xlu0 %230
    %232 = vrot.lane.b32.xlu0 %v165, 127
    %v233 = vpop.permute.xlu0 %232
    %vm234 = vcmp.lt.s32.totalorder %v178, 127
    %v235 = vsel %vm234, %v231, %v233
    %v236 = vsel %vm234, %v229, %v231
    %v237 = vsel %vm234, %v227, %v229
    %v238 = vsel %vm234, %v233, %v227
    %v239 = vlaneseq
    %v240 = vshrl.u32 %v239, 7
    %v241 = vsub.s32 1, %v240
    %v242 = vrot.slane %v167, %v241
    %v243 = vlaneseq
    %v244 = vshrl.u32 %v243, 7
    %v245 = vsub.s32 5, %v244
    %v246 = vrot.slane %v167, %v245
    %v247 = vlaneseq
    %v248 = vshrl.u32 %v247, 7
    %v249 = vsub.s32 1, %v248
    %v250 = vrot.slane %v168, %v249
    %v251 = vlaneseq
    %v252 = vshrl.u32 %v251, 7
    %v253 = vsub.s32 5, %v252
    %v254 = vrot.slane %v168, %v253
    %v259 = vlaneseq
    %v260 = vshrl.u32 %v259, 7
    %v261 = vsub.s32 1, %v260
    %v262 = vrot.slane %v242, %v261
    %v263 = vlaneseq
    %v264 = vshrl.u32 %v263, 7
    %v265 = vsub.s32 1, %v264
    %v266 = vrot.slane %v246, %v265
    %v267 = vlaneseq
    %v268 = vshrl.u32 %v267, 7
    %v269 = vsub.s32 1, %v268
    %v270 = vrot.slane %v250, %v269
    %v271 = vlaneseq
    %v272 = vshrl.u32 %v271, 7
    %v273 = vsub.s32 1, %v272
    %v274 = vrot.slane %v254, %v273
    %v275 = vmul.f32 %v237, %v262
    %v276 = vmul.f32 %v236, %v266
    %v277 = vmul.f32 %v235, %v270
    %v278 = vmul.f32 %v238, %v274
    %280 = vset.pattern.permute.xlu0 3
    %281 = vperm.xlu0 %280, %v166
    %v282 = vpop.permute.xlu0 %281
    %v284 = vmul.f32 %v222, %v282
    %v285 = vmul.f32 %v223, %v282
    %v286 = vmul.f32 %v224, %v282
    %v287 = vmul.f32 %v225, %v282
    %288 = vset.pattern.permute.xlu0 4
    %289 = vperm.xlu0 %288, %v166
    %v290 = vpop.permute.xlu0 %289
    %v292 = vmul.f32 %v162, %v290
    %v293 = vmul.f32 %v163, %v290
    %v294 = vmul.f32 %v164, %v290
    %v295 = vmul.f32 %v165, %v290
    %v296 = vadd.f32 %v284, %v292
    %v297 = vadd.f32 %v285, %v293
    %v298 = vadd.f32 %v286, %v294
    %v299 = vadd.f32 %v287, %v295
    %300 = vset.pattern.permute.xlu0 5
    %301 = vperm.xlu0 %300, %v166
    %v302 = vpop.permute.xlu0 %301
    %v304 = vmul.f32 %v275, %v302
    %v305 = vmul.f32 %v276, %v302
    %v306 = vmul.f32 %v277, %v302
    %v307 = vmul.f32 %v278, %v302
    %v308 = vadd.f32 %v296, %v304
    %v309 = vadd.f32 %v297, %v305
    %v310 = vadd.f32 %v298, %v306
    %v311 = vadd.f32 %v299, %v307
    %312 = vset.pattern.permute.xlu0 0
    %313 = vperm.xlu0 %312, %v166
    %v314 = vpop.permute.xlu0 %313
    %v316 = vmul.f32 %v222, %v314
    %v317 = vmul.f32 %v223, %v314
    %v318 = vmul.f32 %v224, %v314
    %v319 = vmul.f32 %v225, %v314
    %320 = vset.pattern.permute.xlu0 1
    %321 = vperm.xlu0 %320, %v166
    %v322 = vpop.permute.xlu0 %321
    %v324 = vmul.f32 %v162, %v322
    %v325 = vmul.f32 %v163, %v322
    %v326 = vmul.f32 %v164, %v322
    %v327 = vmul.f32 %v165, %v322
    %v328 = vadd.f32 %v316, %v324
    %v329 = vadd.f32 %v317, %v325
    %v330 = vadd.f32 %v318, %v326
    %v331 = vadd.f32 %v319, %v327
    %332 = vset.pattern.permute.xlu0 2
    %333 = vperm.xlu0 %332, %v166
    %v334 = vpop.permute.xlu0 %333
    %v336 = vmul.f32 %v275, %v334
    %v337 = vmul.f32 %v276, %v334
    %v338 = vmul.f32 %v277, %v334
    %v339 = vmul.f32 %v278, %v334
    %v340 = vadd.f32 %v328, %v336
    %v341 = vadd.f32 %v329, %v337
    %v342 = vadd.f32 %v330, %v338
    %v343 = vadd.f32 %v331, %v339
    %344 = vrot.lane.b32.xlu0 %v340, 16
    %v345 = vpop.permute.xlu0 %344
    %346 = vrot.lane.b32.xlu0 %v341, 16
    %v347 = vpop.permute.xlu0 %346
    %348 = vrot.lane.b32.xlu0 %v342, 16
    %v349 = vpop.permute.xlu0 %348
    %350 = vrot.lane.b32.xlu0 %v343, 16
    %v351 = vpop.permute.xlu0 %350
    %vm352 = vcmp.lt.s32.totalorder %v178, 16
    %v353 = vsel %vm352, %v349, %v351
    %v354 = vsel %vm352, %v347, %v349
    %v355 = vsel %vm352, %v345, %v347
    %v356 = vsel %vm352, %v351, %v345
    %v357 = vlaneseq
    %v358 = vshrl.u32 %v357, 7
    %v359 = vsub.s32 2, %v358
    %v360 = vrot.slane %v167, %v359
    %v361 = vlaneseq
    %v362 = vshrl.u32 %v361, 7
    %v363 = vsub.s32 6, %v362
    %v364 = vrot.slane %v167, %v363
    %v365 = vlaneseq
    %v366 = vshrl.u32 %v365, 7
    %v367 = vsub.s32 2, %v366
    %v368 = vrot.slane %v168, %v367
    %v369 = vlaneseq
    %v370 = vshrl.u32 %v369, 7
    %v371 = vsub.s32 6, %v370
    %v372 = vrot.slane %v168, %v371
    %v377 = vlaneseq
    %v378 = vshrl.u32 %v377, 7
    %v379 = vsub.s32 2, %v378
    %v380 = vrot.slane %v360, %v379
    %v381 = vlaneseq
    %v382 = vshrl.u32 %v381, 7
    %v383 = vsub.s32 2, %v382
    %v384 = vrot.slane %v364, %v383
    %v385 = vlaneseq
    %v386 = vshrl.u32 %v385, 7
    %v387 = vsub.s32 2, %v386
    %v388 = vrot.slane %v368, %v387
    %v389 = vlaneseq
    %v390 = vshrl.u32 %v389, 7
    %v391 = vsub.s32 2, %v390
    %v392 = vrot.slane %v372, %v391
    %v393 = vmul.f32 %v356, %v380
    %v394 = vmul.f32 %v355, %v384
    %v395 = vmul.f32 %v354, %v388
    %v396 = vmul.f32 %v353, %v392
    %v397 = vadd.f32 %v308, %v393
    %v398 = vadd.f32 %v309, %v394
    %v399 = vadd.f32 %v310, %v395
    %v400 = vadd.f32 %v311, %v396
    %401 = vset.pattern.permute.xlu0 6
    %402 = vperm.xlu0 %401, %v166
    %v403 = vpop.permute.xlu0 %402
    %v405 = vmul.f32 %v222, %v403
    %v406 = vmul.f32 %v223, %v403
    %v407 = vmul.f32 %v224, %v403
    %v408 = vmul.f32 %v225, %v403
    %409 = vset.pattern.permute.xlu0 7
    %410 = vperm.xlu0 %409, %v166
    %v411 = vpop.permute.xlu0 %410
    %v413 = vmul.f32 %v162, %v411
    %v414 = vmul.f32 %v163, %v411
    %v415 = vmul.f32 %v164, %v411
    %v416 = vmul.f32 %v165, %v411
    %v417 = vadd.f32 %v405, %v413
    %v418 = vadd.f32 %v406, %v414
    %v419 = vadd.f32 %v407, %v415
    %v420 = vadd.f32 %v408, %v416
    %421 = vset.pattern.permute.xlu0 8
    %422 = vperm.xlu0 %421, %v166
    %v423 = vpop.permute.xlu0 %422
    %v425 = vmul.f32 %v275, %v423
    %v426 = vmul.f32 %v276, %v423
    %v427 = vmul.f32 %v277, %v423
    %v428 = vmul.f32 %v278, %v423
    %v429 = vadd.f32 %v417, %v425
    %v430 = vadd.f32 %v418, %v426
    %v431 = vadd.f32 %v419, %v427
    %v432 = vadd.f32 %v420, %v428
    %433 = vrot.lane.b32.xlu0 %v429, 112
    %v434 = vpop.permute.xlu0 %433
    %435 = vrot.lane.b32.xlu0 %v430, 112
    %v436 = vpop.permute.xlu0 %435
    %437 = vrot.lane.b32.xlu0 %v431, 112
    %v438 = vpop.permute.xlu0 %437
    %439 = vrot.lane.b32.xlu0 %v432, 112
    %v440 = vpop.permute.xlu0 %439
    %vm441 = vcmp.lt.s32.totalorder %v178, 112
    %v442 = vsel %vm441, %v438, %v440
    %v443 = vsel %vm441, %v436, %v438
    %v444 = vsel %vm441, %v434, %v436
    %v445 = vsel %vm441, %v440, %v434
    %v446 = vlaneseq
    %v447 = vshrl.u32 %v446, 7
    %v448 = vsub.s32 3, %v447
    %v449 = vrot.slane %v167, %v448
    %v450 = vlaneseq
    %v451 = vshrl.u32 %v450, 7
    %v452 = vsub.s32 7, %v451
    %v453 = vrot.slane %v167, %v452
    %v454 = vlaneseq
    %v455 = vshrl.u32 %v454, 7
    %v456 = vsub.s32 3, %v455
    %v457 = vrot.slane %v168, %v456
    %v458 = vlaneseq
    %v459 = vshrl.u32 %v458, 7
    %v460 = vsub.s32 7, %v459
    %v461 = vrot.slane %v168, %v460
    %v466 = vlaneseq
    %v467 = vshrl.u32 %v466, 7
    %v468 = vsub.s32 3, %v467
    %v469 = vrot.slane %v449, %v468
    %v470 = vlaneseq
    %v471 = vshrl.u32 %v470, 7
    %v472 = vsub.s32 3, %v471
    %v473 = vrot.slane %v453, %v472
    %v474 = vlaneseq
    %v475 = vshrl.u32 %v474, 7
    %v476 = vsub.s32 3, %v475
    %v477 = vrot.slane %v457, %v476
    %v478 = vlaneseq
    %v479 = vshrl.u32 %v478, 7
    %v480 = vsub.s32 3, %v479
    %v481 = vrot.slane %v461, %v480
    %v482 = vmul.f32 %v444, %v469
    %v483 = vmul.f32 %v443, %v473
    %v484 = vmul.f32 %v442, %v477
    %v485 = vmul.f32 %v445, %v481
    %v486 = vadd.f32 %v397, %v482
    %v487 = vadd.f32 %v398, %v483
    %v488 = vadd.f32 %v399, %v484
    %v489 = vadd.f32 %v400, %v485
    %v490 = vld [vmem:[%s4] sm:$0xff]
    %492 = vset.pattern.permute.xlu0 0
    %493 = vperm.xlu0 %492, %v490
    %v494 = vpop.permute.xlu0 %493
    %v496 = vadd.f32 %v486, %v494
    %v497 = vadd.f32 %v487, %v494
    %v498 = vadd.f32 %v488, %v494
    %v499 = vadd.f32 %v489, %v494
    %v500 = vmax.f32 %v496, 0.0
    %v501 = vmax.f32 %v497, 0.0
    %v502 = vmax.f32 %v498, 0.0
    %v503 = vmax.f32 %v499, 0.0
    %v504 = vld [vmem:[%s5] sm:$0xf]
    %v505 = vpack.c.bf16 %v500, %v500
    %v506 = vpack.c.bf16 %v501, %v501
    %v507 = vpack.c.bf16 %v502, %v502
    %v508 = vpack.c.bf16 %v503, %v503
    %vm509 = vcmask 64512
    %v511 = vsel %vm509, %v504, 0
    %vm513 = vcmask 1043456
    %v515 = vsel %vm513, %v505, 0
    %v518 = vsel %vm513, %v506, 0
    %v521 = vsel %vm513, %v507, 0
    %v524 = vsel %vm513, %v508, 0
    %526 = vmatprep.subr.bf16.mxu0 %v518
    %527 = vmatpush1.bf16.msra.mxu0 %v515
    %528 = vmatprep.subr.bf16.mxu0 0
    %529 = vmatpush1.bf16.msra.mxu0 0
    %530 = vmatprep.subr.bf16.mxu0 0
    %531 = vmatpush1.bf16.msra.mxu0 0
    %532 = vmatprep.subr.bf16.mxu0 0
    %533 = vmatpush1.bf16.msra.mxu0 0
    %534 = vmatprep.subr.bf16.mxu0 0
    %535 = vmatpush1.bf16.msra.mxu0 0
    %536 = vmatprep.subr.bf16.mxu0 0
    %537 = vmatpush1.bf16.msra.mxu0 0
    %538 = vmatprep.subr.bf16.mxu0 0
    %539 = vmatpush1.bf16.msra.mxu0 0
    %540 = vmatprep.subr.bf16.mxu0 0
    %541 = vmatpush1.bf16.msra.mxu0 0
    %542 = vmatprep.subr.bf16.mxu0 0
    %543 = vmatpush1.bf16.msra.mxu0 0
    %544 = vmatprep.subr.bf16.mxu0 0
    %545 = vmatpush1.bf16.msra.mxu0 0
    %546 = vmatprep.subr.bf16.mxu0 0
    %547 = vmatpush1.bf16.msra.mxu0 0
    %548 = vmatprep.subr.bf16.mxu0 0
    %549 = vmatpush1.bf16.msra.mxu0 0
    %550 = vmatprep.subr.bf16.mxu0 0
    %551 = vmatpush1.bf16.msra.mxu0 0
    %552 = vmatprep.subr.bf16.mxu0 0
    %553 = vmatpush1.bf16.msra.mxu0 0
    %554 = vmatprep.subr.bf16.mxu0 0
    %555 = vmatpush1.bf16.msra.mxu0 0
    %556 = vmatprep.subr.bf16.mxu0 0
    %557 = vmatpush1.bf16.msra.mxu0 0
    %558 = vmatprep.mubr.bf16.mxu0 0
    %559 = vmatmul.mubr.bf16.gmra.mrb[0].mxu0 %v511
    %v560 = vpop.f32.mrb[0].mxu0
    %v561 = vadd.f32 0.0, %v560
    %v562 = vpop.f32.mrb[0].mxu0
    %v563 = vadd.f32 0.0, %v562
    %v564 = vpop.f32.mrb[0].mxu0
    %v565 = vpop.f32.mrb[0].mxu0
    %566 = vdwg.mxu0
    %567 = vmatprep.subr.bf16.mxu0 %v524
    %568 = vmatpush1.bf16.msra.mxu0 %v521
    %569 = vmatprep.subr.bf16.mxu0 0
    %570 = vmatpush1.bf16.msra.mxu0 0
    %571 = vmatprep.subr.bf16.mxu0 0
    %572 = vmatpush1.bf16.msra.mxu0 0
    %573 = vmatprep.subr.bf16.mxu0 0
    %574 = vmatpush1.bf16.msra.mxu0 0
    %575 = vmatprep.subr.bf16.mxu0 0
    %576 = vmatpush1.bf16.msra.mxu0 0
    %577 = vmatprep.subr.bf16.mxu0 0
    %578 = vmatpush1.bf16.msra.mxu0 0
    %579 = vmatprep.subr.bf16.mxu0 0
    %580 = vmatpush1.bf16.msra.mxu0 0
    %581 = vmatprep.subr.bf16.mxu0 0
    %582 = vmatpush1.bf16.msra.mxu0 0
    %583 = vmatprep.subr.bf16.mxu0 0
    %584 = vmatpush1.bf16.msra.mxu0 0
    %585 = vmatprep.subr.bf16.mxu0 0
    %586 = vmatpush1.bf16.msra.mxu0 0
    %587 = vmatprep.subr.bf16.mxu0 0
    %588 = vmatpush1.bf16.msra.mxu0 0
    %589 = vmatprep.subr.bf16.mxu0 0
    %590 = vmatpush1.bf16.msra.mxu0 0
    %591 = vmatprep.subr.bf16.mxu0 0
    %592 = vmatpush1.bf16.msra.mxu0 0
    %593 = vmatprep.subr.bf16.mxu0 0
    %594 = vmatpush1.bf16.msra.mxu0 0
    %595 = vmatprep.subr.bf16.mxu0 0
    %596 = vmatpush1.bf16.msra.mxu0 0
    %597 = vmatprep.subr.bf16.mxu0 0
    %598 = vmatpush1.bf16.msra.mxu0 0
    %599 = vmatprep.mubr.bf16.mxu0 0
    %600 = vmatmul.mubr.bf16.gmra.mrb[0].mxu0 %v511
    %v601 = vpop.f32.mrb[0].mxu0
    %v602 = vadd.f32 0.0, %v601
    %v603 = vpop.f32.mrb[0].mxu0
    %v604 = vadd.f32 0.0, %v603
    %v605 = vpop.f32.mrb[0].mxu0
    %v606 = vpop.f32.mrb[0].mxu0
    %607 = vdwg.mxu0
    %v608 = vld [vmem:[%s6] sm:$0xff]
    %610 = vset.pattern.permute.xlu0 0
    %611 = vperm.xlu0 %610, %v608
    %v612 = vpop.permute.xlu0 %611
    %v614 = vadd.f32 %v561, %v612
    %v615 = vadd.f32 %v563, %v612
    %616 = vst [vmem:[#allocation2] sm:$0xff] %v614
    %617 = vst [vmem:[#allocation2 + $0x8] sm:$0xff] %v615
    %v618 = vadd.f32 %v602, %v612
    %v619 = vadd.f32 %v604, %v612
    %s620 = scalar_lea.vmem [#allocation2], 16
    %621 = vst [vmem:[%s620] sm:$0xff] %v618
    %622 = vst [vmem:[%s620 + $0x8] sm:$0xff] %v619
    // Predicated region
    $region34: #{tpu_custom_call.1} parent=1 // pred_check
      _
    $region35: #{tpu_custom_call.1} parent=1 // pred_check_branch
      %624 = sbr.rel (0) target = $region37
    $region36: #{tpu_custom_call.1} parent=1 // pred_region
      %s626 = ssub.s32 512, 512
      %627 = vsyncadd [#allocation3], %s626
      %s628 = sshll.u32 [#allocation2], 4
      %s629 = int_to_ptr.vmem [resolvable:$true] %s628
      %634 = dma.vmem_to_hbm [thread:$0]  %s629, 512, %s8, [#allocation3], 256, 256, 16
    $region37: #{tpu_custom_call.1} parent=1 // pred_fallthru
      _
    // Predicated region
    $region38: #{tpu_custom_call.1} parent=1 // pred_check
      _
    $region39: #{tpu_custom_call.1} parent=1 // pred_check_branch
      %636 = sbr.rel (0) target = $region41
    $region40: #{tpu_custom_call.1} parent=1 // pred_region
      %637 = dma.done [#allocation3], 512
    $region41: #{tpu_custom_call.1} parent=1 // pred_fallthru
      _
    %638 = vsyncpa [#allocation3], 1

</llo_original>
